<compile_context>
chip_gen: v5e
topology: v5e:2x2
jax: 0.10.0
libtpu: 0.0.40
codegen_flags: <defaults>
</compile_context>

<pallas_src>
import functools

import jax
import jax.numpy as jnp
from jax import lax
from jax.experimental import pallas as pl
from jax.experimental.pallas import tpu as pltpu


def _cam_kernel(beta_ref, x_ref, o_ref, attn_ref, w_ref, *feat_scratch,
                n_hw, tile_hw, matmul_dtype, approx_recip):
    # beta_ref: SMEM (1,); x_ref/o_ref block: (b_block, C, tile_hw)
    # attn_ref: (b_block, C, C) f32 Gram accumulator (persists across t)
    # w_ref:    (b_block, C, C) matmul_dtype softmaxed attention
    # feat_scratch (optional): (b_block, C, hw_pad) x-dtype resident feat cache
    feat_ref = feat_scratch[0] if feat_scratch else None
    t = pl.program_id(1)

    @pl.when(t == 0)
    def _init():
        attn_ref[...] = jnp.zeros_like(attn_ref)

    # ---- phase 0: accumulate the Gram matrix over HW tiles -------------------
    @pl.when(t < n_hw)
    def _accumulate():
        xt = x_ref[...]                                      # (b, C, tile)
        if feat_ref is not None:
            start = pl.multiple_of(t * tile_hw, 128)
            feat_ref[:, :, pl.ds(start, tile_hw)] = xt       # fill VMEM feat cache
        f = xt.astype(matmul_dtype)
        attn_ref[...] += jnp.einsum(
            "bcn,bdn->bcd", f, f, preferred_element_type=jnp.float32)

    # ---- end of phase 0: softmax(rowmax - attn) == exp(rowmin - attn)/sum ----
    @pl.when(t == n_hw - 1)
    def _softmax():
        attn = attn_ref[...]                                 # (b, C, C) f32
        rowmin = jnp.min(attn, axis=-1, keepdims=True)       # single XLU reduce
        e = jnp.exp(rowmin - attn)                           # <= 1, stable
        denom = jnp.sum(e, axis=-1, keepdims=True)
        if approx_recip:
            inv = pl.reciprocal(denom, approx=True)          # EUP reciprocal
        else:
            inv = 1.0 / denom
        # Cast once here; phase 1 reads the matmul-ready copy every step.
        w_ref[...] = (e * inv).astype(w_ref.dtype)

    # ---- phase 1: feat_e tile = attn_sm @ feat tile, fused residual ----------
    @pl.when(t >= n_hw)
    def _apply():
        s = t - n_hw
        if feat_ref is not None:
            start = pl.multiple_of(s * tile_hw, 128)
            xt = feat_ref[:, :, pl.ds(start, tile_hw)]       # no HBM re-read
        else:
            xt = x_ref[...]                                  # re-streamed from HBM
        fe = jnp.einsum("bcd,bdn->bcn", w_ref[...], xt.astype(matmul_dtype),
                        preferred_element_type=jnp.float32)
        beta = beta_ref[0]
        o_ref[...] = (beta * fe + xt.astype(jnp.float32)).astype(o_ref.dtype)


def channel_attention(x, beta, *, tile_hw=None, b_block=None,
                      matmul_dtype=jnp.bfloat16, use_feat_cache=None,
                      approx_recip=None, input_buffers=2,
                      vmem_limit_bytes=None):
    """x: (B, C, H, W); beta: shape-(1,) float32 parameter."""
    B, C, H, W = x.shape
    HW = H * W
    x_bytes = jnp.dtype(x.dtype).itemsize
    mm_bytes = jnp.dtype(matmul_dtype).itemsize
    if approx_recip is None:
        approx_recip = jnp.dtype(matmul_dtype) != jnp.dtype(jnp.float32)

    # How many batch elements share a grid step (amortizes per-step overhead and
    # fills MXU / softmax vregs when C is small).
    if b_block is None:
        b_block = 1
        if C <= 128:
            for cand in (8, 4, 2):
                if B % cand == 0:
                    b_block = cand
                    break
    assert B % b_block == 0, "b_block must divide B"

    # ---- generation-aware VMEM budgeting -------------------------------------
    try:
        vmem_cap = int(pltpu.get_tpu_info().vmem_capacity_bytes)
    except Exception:
        vmem_cap = 64 * 1024 * 1024                      # conservative fallback
    vmem_cap = min(max(vmem_cap, 32 << 20), 128 << 20)   # sanity clamp
    if vmem_limit_bytes is None:
        vmem_limit_bytes = int(min(max(vmem_cap * 0.85, 32 << 20), 110 << 20))
    headroom = max(8 << 20, vmem_cap // 8)               # Mosaic internal scratch
    budget = max(int(vmem_limit_bytes) - headroom, 4 << 20)

    # Persistent scratch that must be subtracted from the streaming budget.
    attn_bytes = b_block * C * C * 4
    w_bytes = b_block * C * C * mm_bytes
    hw_128 = pl.cdiv(HW, 128) * 128
    cache_bytes = b_block * C * hw_128 * x_bytes
    # Per 128 output lanes: double-buffered in + out blocks (x dtype) plus
    # bf16-cast / f32 temporaries materialized in the body.
    per_128 = b_block * C * 128 * (4 * x_bytes + mm_bytes + 8)
    stream_budget = max(budget - attn_bytes - w_bytes, per_128)

    def _largest_divisor(n, cap):
        d = 1
        for cand in range(1, n + 1):
            if n % cand == 0 and cand <= cap:
                d = cand
        return d

    # ---- tile_hw: a 128-multiple that divides round_up(HW, 128) --------------
    if tile_hw is None:
        n128 = hw_128 // 128
        d_nocache = _largest_divisor(n128, max(1, stream_budget // per_128))
        d = d_nocache
        if use_feat_cache is None:
            use_feat_cache = False
            if d_nocache < n128 and cache_bytes + per_128 <= stream_budget:
                d_cache = _largest_divisor(
                    n128, max(1, (stream_budget - cache_bytes) // per_128))
                if 4 * d_cache >= d_nocache:   # don't shrink tiles >4x for the cache
                    use_feat_cache = True
                    d = d_cache
        elif use_feat_cache:
            d = _largest_divisor(
                n128, max(1, (stream_budget - cache_bytes) // per_128))
        tile_hw = d * 128
    else:
        assert tile_hw % 128 == 0, "tile_hw must be a multiple of 128"
        if use_feat_cache is None:
            n_tiles = pl.cdiv(HW, tile_hw)
            per_tile = per_128 * (tile_hw // 128)
            use_feat_cache = bool(n_tiles > 1
                                  and cache_bytes + per_tile <= stream_budget)

    hw_pad = pl.cdiv(HW, tile_hw) * tile_hw
    n_hw = hw_pad // tile_hw

    x_flat = x.reshape(B, C, HW)
    if hw_pad != HW:
        # Only hit when H*W is not a multiple of 128 (or a user tile doesn't
        # divide it).  Zero padding is exact for the Gram; padded output columns
        # are sliced off below.
        x_flat = jnp.pad(x_flat, ((0, 0), (0, 0), (0, hw_pad - HW)))

    kernel = functools.partial(_cam_kernel, n_hw=n_hw, tile_hw=tile_hw,
                               matmul_dtype=matmul_dtype,
                               approx_recip=approx_recip)

    if use_feat_cache:
        # Phase 1 reads from the VMEM feat cache -> pin the input block index so
        # Pallas never issues the second HBM read pass.
        x_index = lambda b, t: (b, 0, jnp.where(t < n_hw, t, n_hw - 1))
    else:
        x_index = lambda b, t: (b, 0, jnp.where(t < n_hw, t, t - n_hw))

    x_spec_kwargs = {}
    if input_buffers != 2:
        # Optional deeper input pipeline across the phase-0 -> phase-1 boundary.
        x_spec_kwargs["pipeline_mode"] = pl.Buffered(input_buffers)
    x_spec = pl.BlockSpec((b_block, C, tile_hw), x_index, **x_spec_kwargs)

    scratch_shapes = [pltpu.VMEM((b_block, C, C), jnp.float32),   # Gram accumulator
                      pltpu.VMEM((b_block, C, C), matmul_dtype)]  # softmaxed attn
    if use_feat_cache:
        scratch_shapes.append(pltpu.VMEM((b_block, C, hw_pad), x.dtype))

    out_flat = pl.pallas_call(
        kernel,
        out_shape=jax.ShapeDtypeStruct((B, C, hw_pad), x.dtype),
        grid_spec=pltpu.PrefetchScalarGridSpec(
            num_scalar_prefetch=0,
            grid=(B // b_block, 2 * n_hw),                   # (batch, phase*tile)
            in_specs=[
                pl.BlockSpec(memory_space=pltpu.SMEM),       # beta scalar
                x_spec,
            ],
            out_specs=pl.BlockSpec(
                (b_block, C, tile_hw),
                # pinned to tile 0 during phase 0 (no writeback of unwritten
                # data), then walks the HW tiles during phase 1.
                lambda b, t: (b, 0, jnp.where(t < n_hw, 0, t - n_hw))),
            scratch_shapes=scratch_shapes,
        ),
        compiler_params=pltpu.CompilerParams(
            dimension_semantics=("parallel", "arbitrary"),
            vmem_limit_bytes=int(vmem_limit_bytes),
        ),
    )(beta, x_flat)

    if hw_pad != HW:
        out_flat = out_flat[:, :, :HW]
    return out_flat.reshape(B, C, H, W)


def _reference(x, beta, matmul_dtype=None):
    """Pure-JAX reference with PyTorch semantics (optionally bf16 matmul inputs)."""
    B, C, H, W = x.shape
    feat = x.reshape(B, C, H * W)
    fm = feat if matmul_dtype is None else feat.astype(matmul_dtype)
    attn = jnp.einsum("bcn,bdn->bcd", fm, fm,
                      preferred_element_type=jnp.float32,
                      precision=lax.Precision.HIGHEST)
    attn_new = jnp.max(attn, axis=-1, keepdims=True) - attn
    attn_sm = jax.nn.softmax(attn_new, axis=-1)
    sm = attn_sm if matmul_dtype is None else attn_sm.astype(matmul_dtype)
    feat_e = jnp.einsum("bcd,bdn->bcn", sm, fm,
                        preferred_element_type=jnp.float32,
                        precision=lax.Precision.HIGHEST).reshape(B, C, H, W)
    return beta[0] * feat_e + x


if __name__ == "__main__":
    key = jax.random.PRNGKey(0)
    B, C, H, W = 2, 4, 16, 16
    x = jax.random.normal(key, (B, C, H, W), dtype=jnp.float32)
    beta = jnp.array([0.5], dtype=jnp.float32)

    # Default path: bf16 MXU inputs, f32 accumulation, auto tile/cache sizing.
    out = jax.block_until_ready(channel_attention(x, beta))
    ref_bf16 = _reference(x, beta, matmul_dtype=jnp.bfloat16)
    assert out.shape == (B, C, H, W)
    assert jnp.allclose(out, ref_bf16, atol=2e-2, rtol=2e-2), (
        float(jnp.max(jnp.abs(out - ref_bf16))))

    # Full-f32 matmul path (exact softmax reciprocal) vs PyTorch-precision ref.
    out_f32 = jax.block_until_ready(
        channel_attention(x, beta, matmul_dtype=jnp.float32))
    ref = _reference(x, beta)
    assert jnp.allclose(out_f32, ref, atol=5e-2, rtol=5e-2), (
        float(jnp.max(jnp.abs(out_f32 - ref))))

    # Multi-tile HW streaming with the VMEM-resident feat cache (n_hw = 2).
    out_cached = jax.block_until_ready(
        channel_attention(x, beta, tile_hw=128, b_block=1))
    assert jnp.allclose(out_cached, ref_bf16, atol=2e-2, rtol=2e-2), (
        float(jnp.max(jnp.abs(out_cached - ref_bf16))))

    # Multi-tile HW streaming with the cache disabled (phase-1 HBM re-stream).
    out_stream = jax.block_until_ready(
        channel_attention(x, beta, tile_hw=128, b_block=1, use_feat_cache=False))
    assert jnp.allclose(out_stream, ref_bf16, atol=2e-2, rtol=2e-2), (
        float(jnp.max(jnp.abs(out_stream - ref_bf16))))

    # Non-128-multiple spatial size exercises the ragged-HW padding fallback.
    x2 = jax.random.normal(jax.random.PRNGKey(1), (2, 4, 10, 10), dtype=jnp.float32)
    out2 = jax.block_until_ready(channel_attention(x2, beta))
    ref2 = _reference(x2, beta, matmul_dtype=jnp.bfloat16)
    assert jnp.allclose(out2, ref2, atol=2e-2, rtol=2e-2), (
        float(jnp.max(jnp.abs(out2 - ref2))))

    # bf16 activations end-to-end (halves all streamed HBM traffic).
    x_bf16 = x.astype(jnp.bfloat16)
    out_bf16 = jax.block_until_ready(channel_attention(x_bf16, beta))
    ref_b = _reference(x_bf16.astype(jnp.float32), beta, matmul_dtype=jnp.bfloat16)
    assert jnp.allclose(out_bf16.astype(jnp.float32), ref_b, atol=1e-1, rtol=1e-1), (
        float(jnp.max(jnp.abs(out_bf16.astype(jnp.float32) - ref_b))))

    # beta = 0 (PyTorch default init) must reduce to identity.
    out0 = jax.block_until_ready(
        channel_attention(x, jnp.zeros((1,), jnp.float32)))
    assert jnp.allclose(out0, x, atol=1e-6)

    print("KERNEL_OK")
</pallas_src>

<mosaic_0001>
module attributes {stable_mosaic.version = 11 : i64} {
  func.func @_cam_kernel(%arg0: i32, %arg1: i32, %arg2: memref<1xf32, #tpu.memory_space<smem>>, %arg3: memref<2x4x256xf32, #tpu.memory_space<vmem>>, %arg4: memref<2x4x256xf32, #tpu.memory_space<vmem>>, %arg5: memref<2x4x4xf32, #tpu.memory_space<vmem>>, %arg6: memref<2x4x4xbf16, #tpu.memory_space<vmem>>) attributes {dimension_semantics = [#tpu.dimension_semantics<parallel>, #tpu.dimension_semantics<arbitrary>], iteration_bounds = array<i64: 1, 2>, scalar_prefetch = 0 : i64, scratch_operands = 2 : i64, tpu.core_type = #tpu.core_type<tc>, window_params = [{transform_indices = @transform_0, window_bounds = array<i64: 1>}, {transform_indices = @transform_1, window_bounds = array<i64: 2, 4, 256>}, {transform_indices = @transform_2, window_bounds = array<i64: 2, 4, 256>}]} {
    %c0_i32 = arith.constant 0 : i32
    %0 = arith.cmpi eq, %arg1, %c0_i32 : i32
    %1 = arith.extui %0 : i1 to i32
    %c0_i32_0 = arith.constant 0 : i32
    %2 = arith.cmpi ne, %1, %c0_i32_0 : i32
    scf.if %2 {
      %cst = arith.constant 0.000000e+00 : f32
      %12 = vector.broadcast %cst : f32 to vector<2x4x4xf32>
      %c0 = arith.constant 0 : index
      %c0_6 = arith.constant 0 : index
      %c0_7 = arith.constant 0 : index
      %13 = vector.load %arg5[%c0, %c0_6, %c0_7] : memref<2x4x4xf32, #tpu.memory_space<vmem>>, vector<2x4x4xf32>
      tpu.vector_store %arg5[%c0, %c0_6, %c0_7], %12 {strides = array<i32>} : memref<2x4x4xf32, #tpu.memory_space<vmem>>, vector<2x4x4xf32>,
    } else {
    }
    %c1_i32 = arith.constant 1 : i32
    %3 = arith.cmpi slt, %arg1, %c1_i32 : i32
    %4 = arith.extui %3 : i1 to i32
    %c0_i32_1 = arith.constant 0 : i32
    %5 = arith.cmpi ne, %4, %c0_i32_1 : i32
    scf.if %5 {
      %c0 = arith.constant 0 : index
      %c0_6 = arith.constant 0 : index
      %c0_7 = arith.constant 0 : index
      %12 = vector.load %arg3[%c0, %c0_6, %c0_7] : memref<2x4x256xf32, #tpu.memory_space<vmem>>, vector<2x4x256xf32>
      %13 = arith.truncf %12 : vector<2x4x256xf32> to vector<2x4x256xbf16>
      %c0_8 = arith.constant 0 : index
      %c0_9 = arith.constant 0 : index
      %c0_10 = arith.constant 0 : index
      %14 = vector.load %arg5[%c0_8, %c0_9, %c0_10] : memref<2x4x4xf32, #tpu.memory_space<vmem>>, vector<2x4x4xf32>
      "tpu.trace_start"() <{level = 10 : i32, message = "bcn,bdn->bcd"}> : () -> ()
      %cst = arith.constant dense<0.000000e+00> : vector<2x4x4xf32>
      %15 = tpu.matmul %13, %13, %cst {dimension_numbers = #tpu.dot_dimension_numbers<[2], [2], [1], [1], [0, 0, 0, 1, 1, 1], [0], [0]>} : vector<2x4x256xbf16>, vector<2x4x256xbf16>, vector<2x4x4xf32> -> vector<2x4x4xf32>
      "tpu.trace_stop"() : () -> ()
      %16 = arith.addf %14, %15 : vector<2x4x4xf32>
      %c0_11 = arith.constant 0 : index
      %c0_12 = arith.constant 0 : index
      %c0_13 = arith.constant 0 : index
      %17 = vector.load %arg5[%c0_11, %c0_12, %c0_13] : memref<2x4x4xf32, #tpu.memory_space<vmem>>, vector<2x4x4xf32>
      tpu.vector_store %arg5[%c0_11, %c0_12, %c0_13], %16 {strides = array<i32>} : memref<2x4x4xf32, #tpu.memory_space<vmem>>, vector<2x4x4xf32>,
    } else {
    }
    %c0_i32_2 = arith.constant 0 : i32
    %6 = arith.cmpi eq, %arg1, %c0_i32_2 : i32
    %7 = arith.extui %6 : i1 to i32
    %c0_i32_3 = arith.constant 0 : i32
    %8 = arith.cmpi ne, %7, %c0_i32_3 : i32
    scf.if %8 {
      %c0 = arith.constant 0 : index
      %c0_6 = arith.constant 0 : index
      %c0_7 = arith.constant 0 : index
      %12 = vector.load %arg5[%c0, %c0_6, %c0_7] : memref<2x4x4xf32, #tpu.memory_space<vmem>>, vector<2x4x4xf32>
      %cst = arith.constant dense<0x7F800000> : vector<2x4xf32>
      %13 = vector.multi_reduction <minimumf>, %12, %cst [2] : vector<2x4x4xf32> to vector<2x4xf32>
      %14 = vector.shape_cast %13 : vector<2x4xf32> to vector<2x4x1xf32>
      %15 = vector.broadcast %14 : vector<2x4x1xf32> to vector<2x4x4xf32>
      %16 = arith.subf %15, %12 : vector<2x4x4xf32>
      %17 = math.exp %16 : vector<2x4x4xf32>
      %cst_8 = arith.constant dense<0.000000e+00> : vector<2x4xf32>
      %18 = vector.multi_reduction <add>, %17, %cst_8 [2] : vector<2x4x4xf32> to vector<2x4xf32>
      %19 = vector.shape_cast %18 : vector<2x4xf32> to vector<2x4x1xf32>
      %20 = tpu.reciprocal %19 {approx = true} : vector<2x4x1xf32> -> vector<2x4x1xf32>
      %21 = vector.broadcast %20 : vector<2x4x1xf32> to vector<2x4x4xf32>
      %22 = arith.mulf %17, %21 : vector<2x4x4xf32>
      %23 = arith.truncf %22 : vector<2x4x4xf32> to vector<2x4x4xbf16>
      %c0_9 = arith.constant 0 : index
      %c0_10 = arith.constant 0 : index
      %c0_11 = arith.constant 0 : index
      %24 = vector.load %arg6[%c0_9, %c0_10, %c0_11] : memref<2x4x4xbf16, #tpu.memory_space<vmem>>, vector<2x4x4xbf16>
      tpu.vector_store %arg6[%c0_9, %c0_10, %c0_11], %23 {strides = array<i32>} : memref<2x4x4xbf16, #tpu.memory_space<vmem>>, vector<2x4x4xbf16>,
    } else {
    }
    %c1_i32_4 = arith.constant 1 : i32
    %9 = arith.cmpi sge, %arg1, %c1_i32_4 : i32
    %10 = arith.extui %9 : i1 to i32
    %c0_i32_5 = arith.constant 0 : i32
    %11 = arith.cmpi ne, %10, %c0_i32_5 : i32
    scf.if %11 {
      %c0 = arith.constant 0 : index
      %c0_6 = arith.constant 0 : index
      %c0_7 = arith.constant 0 : index
      %12 = vector.load %arg3[%c0, %c0_6, %c0_7] : memref<2x4x256xf32, #tpu.memory_space<vmem>>, vector<2x4x256xf32>
      %c0_8 = arith.constant 0 : index
      %c0_9 = arith.constant 0 : index
      %c0_10 = arith.constant 0 : index
      %13 = vector.load %arg6[%c0_8, %c0_9, %c0_10] : memref<2x4x4xbf16, #tpu.memory_space<vmem>>, vector<2x4x4xbf16>
      %14 = arith.truncf %12 : vector<2x4x256xf32> to vector<2x4x256xbf16>
      "tpu.trace_start"() <{level = 10 : i32, message = "bcd,bdn->bcn"}> : () -> ()
      %cst = arith.constant dense<0.000000e+00> : vector<2x4x256xf32>
      %15 = tpu.matmul %13, %14, %cst {dimension_numbers = #tpu.dot_dimension_numbers<[2], [1], [1], [2], [0, 0, 0, 1, 1, 2], [0], [0]>} : vector<2x4x4xbf16>, vector<2x4x256xbf16>, vector<2x4x256xf32> -> vector<2x4x256xf32>
      "tpu.trace_stop"() : () -> ()
      %c0_11 = arith.constant 0 : index
      %16 = memref.load %arg2[%c0_11] : memref<1xf32, #tpu.memory_space<smem>>
      %17 = vector.broadcast %16 : f32 to vector<2x4x256xf32>
      %18 = arith.mulf %17, %15 : vector<2x4x256xf32>
      %19 = arith.addf %18, %12 : vector<2x4x256xf32>
      %c0_12 = arith.constant 0 : index
      %c0_13 = arith.constant 0 : index
      %c0_14 = arith.constant 0 : index
      %20 = vector.load %arg4[%c0_12, %c0_13, %c0_14] : memref<2x4x256xf32, #tpu.memory_space<vmem>>, vector<2x4x256xf32>
      tpu.vector_store %arg4[%c0_12, %c0_13, %c0_14], %19 {strides = array<i32>} : memref<2x4x256xf32, #tpu.memory_space<vmem>>, vector<2x4x256xf32>,
    } else {
    }
    return
  }
  func.func @transform_0(%arg0: i32, %arg1: i32) -> i32 {
    %c0_i32 = arith.constant 0 : i32
    %c0_i32_0 = arith.constant 0 : i32
    return %c0_i32 : i32
  }
  func.func @transform_1(%arg0: i32, %arg1: i32) -> (i32, i32, i32) {
    %c1_i32 = arith.constant 1 : i32
    %0 = arith.cmpi slt, %arg1, %c1_i32 : i32
    %c1_i32_0 = arith.constant 1 : i32
    %1 = arith.subi %arg1, %c1_i32_0 : i32
    %2 = arith.select %0, %arg1, %1 : i32
    %c0_i32 = arith.constant 0 : i32
    %c0_i32_1 = arith.constant 0 : i32
    return %arg0, %c0_i32, %2 : i32, i32, i32
  }
  func.func @transform_2(%arg0: i32, %arg1: i32) -> (i32, i32, i32) {
    %c1_i32 = arith.constant 1 : i32
    %0 = arith.cmpi slt, %arg1, %c1_i32 : i32
    %c1_i32_0 = arith.constant 1 : i32
    %1 = arith.subi %arg1, %c1_i32_0 : i32
    %c0_i32 = arith.constant 0 : i32
    %2 = arith.select %0, %c0_i32, %1 : i32
    %c0_i32_1 = arith.constant 0 : i32
    %c0_i32_2 = arith.constant 0 : i32
    return %arg0, %c0_i32_1, %2 : i32, i32, i32
  }
}

</mosaic_0001>

<llo_original>
// kernel: tpu_custom_call.1
$region0: #{tpu_custom_call.1}
  #allocation0 [shape = 'u32[]', space=smem, size = 0x4, offset = 0x4, fixed_abs, tag = 'smem constant byte address 0x4 - core index']
  #allocation1 [shape = 'u32[72,128]{1,0:T(1,128)}', space=vmem, size = 0x9000, scoped, tag = 'internal scratch']
  #allocation2 [shape = 'f32[2,4,4]{2,1,0:T(4,128)}', space=vmem, size = 0x1000, scoped, tag = 'scratch operand']
  #allocation3 [shape = 'bf16[2,4,4]{2,1,0:T(4,128)(2,1)}', space=vmem, size = 0x800, scoped, tag = 'scratch operand']
  #allocation4 [shape = 'f32[1]{0:T(128)S(6)}', space=smem, size = 0x200, scoped, tag = 'scoped memory for tpu_custom_call.1']
  %s0 = inlined_call_operand.<no memory space> [shape: f32[1], index: 0, kind: input, shape index: {}]
  %s1 = inlined_call_operand.hbm [shape: f32[2,4,256], index: 1, kind: input, shape index: {}]
  %s2 = inlined_call_operand.hbm [shape: f32[2,4,256], index: 2, kind: output, shape index: {}]
  %s3 = sld [smem:[#allocation0]]
  $region61: #{tpu_custom_call.1} parent=0
    _
  %s5 = ssub.s32 1, %s3
  %s6 = scalar_select 0, %s5, %s3
  %7 = sst [smem:[#allocation4]] %s0
  $region1: #{tpu_custom_call.1} parent=0
    #allocation5 [shape = 'u8[16384]{0}', space=vmem, size = 0x4000, scoped, tag = 'input window, operand 1']
    #allocation6 [shape = 's32[2]{0}', space=sflag, size = 0x8, scoped, tag = 'scoped memory for tpu_custom_call.1']
    #allocation7 [shape = 's32[2]{0}', space=sflag, size = 0x8, scoped, tag = 'scoped memory for tpu_custom_call.1']
    #allocation8 [shape = 'u8[16384]{0}', space=vmem, size = 0x4000, scoped, tag = 'output window, operand 0']
    %8 = vsyncpa [#allocation6], 0
    %s9 = scalar_lea.sflag [#allocation6], 1
    %10 = vsyncpa %s9, 0
    %11 = vsyncpa [#allocation7], 0
    %s12 = scalar_lea.sflag [#allocation7], 1
    %13 = vsyncpa %s12, 0
    loop: start=0, step=1, limit=4
    $region2: #{tpu_custom_call.1} parent=1 // loop_pre_header
      _
    $region3: #{tpu_custom_call.1} parent=1 // loop_header
      %s15 = sphi 0, %s19
      %p16 = scmp.ge.s32.totalorder %s15, 4
      %s22 = sphi 0, %s34
      %s23 = sphi 0, %s30
      %s24 = sphi 0, %s22
      %s25 = sphi 0, %s23
      %s26 = sphi 0, %s24
      %s27 = sphi 0, %s25
      %s35 = sphi 0, %s35
      %s37 = sphi 0, %s35
      %s38 = sphi 0, %s37
      %s52 = sphi 0, %s38
      %s66 = sphi 0, %s68
      %s69 = sphi 0, %s66
      %s70 = sphi 0, %s69
      %s86 = sphi 0, %s70
      %s100 = sphi 0, %s102
      %s103 = sphi 0, %s100
      %s104 = sphi 0, %s103
      %s120 = sphi 0, %s104
    $region4: #{tpu_custom_call.1} parent=1 // loop_header_branch
      %18 = sbr.rel (%p16) target = $region8
    $region5: #{tpu_custom_call.1} parent=1 // loop_body
      %s20 = ssub.s32 %s15, 1
      %s21 = ssub.s32 %s15, 2
      %s28 = sadd.s32 1, %s23
      %p29 = scmp.ge.s32.totalorder %s28, 2
      %s30 = scalar_select %p29, 0, %s28
      %s31 = sadd.s32 1, %s22
      %s32 = scalar_select %p29, %s31, %s22
      %p33 = scmp.ge.s32.totalorder %s32, 1
      %s34 = scalar_select %p33, 0, %s32
      %s36 = sadd.s32 %s35, 1
      %p39 = scmp.eq.s32.totalorder %s15, 1
      %p40 = scmp.ne.s32.totalorder %s35, %s37
      %p41 = scmp.eq.s32.totalorder %s15, 0
      %p42 = por %p40, %p41
      %p43 = scmp.ne.s32.totalorder %s35, %s37
      %p44 = scmp.eq.s32.totalorder %s20, 1
      %p45 = por %p43, %p44
      %p46 = scmp.ne.s32.totalorder %s37, %s38
      %p47 = scmp.eq.s32.totalorder %s20, 0
      %p48 = por %p46, %p47
      %p49 = scmp.ne.s32.totalorder %s37, %s38
      %p50 = scmp.eq.s32.totalorder %s21, 1
      %p51 = por %p49, %p50
      %p53 = scmp.ne.s32.totalorder %s38, %s52
      %p54 = scmp.eq.s32.totalorder %s21, 0
      %p55 = por %p53, %p54
      %p56 = scmp.lt.s32.totalorder %s23, 1
      %s57 = ssub.s32 %s23, 1
      %s58 = scalar_select %p56, %s23, %s57
      %p59 = scmp.lt.s32.totalorder %s30, 1
      %s60 = ssub.s32 %s30, 1
      %s61 = scalar_select %p59, %s30, %s60
      %s62 = ssub.s32 %s22, %s34
      %s63 = ssub.s32 %s58, %s61
      %s64 = sor.u32 %s62, %s63
      %p65 = scmp.eq.s32.totalorder %s64, 0
      %s67 = sadd.s32 %s66, 1
      %s68 = scalar_select %p65, %s66, %s67
      %p71 = pneg %p65
      %p72 = scmp.eq.s32.totalorder %s15, 1
      %p73 = por %p71, %p72
      %p74 = scmp.ne.s32.totalorder %s66, %s69
      %p75 = scmp.eq.s32.totalorder %s15, 0
      %p76 = por %p74, %p75
      %p77 = scmp.ne.s32.totalorder %s66, %s69
      %p78 = scmp.eq.s32.totalorder %s20, 1
      %p79 = por %p77, %p78
      %p80 = scmp.ne.s32.totalorder %s69, %s70
      %p81 = scmp.eq.s32.totalorder %s20, 0
      %p82 = por %p80, %p81
      %p83 = scmp.ne.s32.totalorder %s69, %s70
      %p84 = scmp.eq.s32.totalorder %s21, 1
      %p85 = por %p83, %p84
      %p87 = scmp.ne.s32.totalorder %s70, %s86
      %p88 = scmp.eq.s32.totalorder %s21, 0
      %p89 = por %p87, %p88
      %p90 = scmp.lt.s32.totalorder %s23, 1
      %s91 = ssub.s32 %s23, 1
      %s92 = scalar_select %p90, 0, %s91
      %p93 = scmp.lt.s32.totalorder %s30, 1
      %s94 = ssub.s32 %s30, 1
      %s95 = scalar_select %p93, 0, %s94
      %s96 = ssub.s32 %s22, %s34
      %s97 = ssub.s32 %s92, %s95
      %s98 = sor.u32 %s96, %s97
      %p99 = scmp.eq.s32.totalorder %s98, 0
      %s101 = sadd.s32 %s100, 1
      %s102 = scalar_select %p99, %s100, %s101
      %p105 = pneg %p99
      %p106 = scmp.eq.s32.totalorder %s15, 1
      %p107 = por %p105, %p106
      %p108 = scmp.ne.s32.totalorder %s100, %s103
      %p109 = scmp.eq.s32.totalorder %s15, 0
      %p110 = por %p108, %p109
      %p111 = scmp.ne.s32.totalorder %s100, %s103
      %p112 = scmp.eq.s32.totalorder %s20, 1
      %p113 = por %p111, %p112
      %p114 = scmp.ne.s32.totalorder %s103, %s104
      %p115 = scmp.eq.s32.totalorder %s20, 0
      %p116 = por %p114, %p115
      %p117 = scmp.ne.s32.totalorder %s103, %s104
      %p118 = scmp.eq.s32.totalorder %s21, 1
      %p119 = por %p117, %p118
      %p121 = scmp.ne.s32.totalorder %s104, %s120
      %p122 = scmp.eq.s32.totalorder %s21, 0
      %p123 = por %p121, %p122
      %p124 = scmp.le.s32.totalorder 1, %s15
      %p125 = scmp.lt.s32.totalorder %s15, 3
      %p126 = pnand %p124, %p125
      %p127 = pneg %p126
      // Predicated region
      $region9: #{tpu_custom_call.1} parent=5 // pred_check
        _
      $region10: #{tpu_custom_call.1} parent=5 // pred_check_branch
        %129 = sbr.rel (%p126) target = $region12
      $region11: #{tpu_custom_call.1} parent=5 // pred_region
        %s130 = ssub.s32 %s15, 1
        // Predicated region
        $region13: #{tpu_custom_call.1} parent=11 // pred_check
          %p131 = pneg %p48
        $region14: #{tpu_custom_call.1} parent=11 // pred_check_branch
          %133 = sbr.rel (%p131) target = $region16
        $region15: #{tpu_custom_call.1} parent=11 // pred_region
          _
        $region16: #{tpu_custom_call.1} parent=11 // pred_fallthru
          _
      $region12: #{tpu_custom_call.1} parent=5 // pred_fallthru
        _
      %p134 = scmp.lt.s32.totalorder %s15, 2
      // Predicated region
      $region17: #{tpu_custom_call.1} parent=5 // pred_check
        %p135 = pneg %p134
      $region18: #{tpu_custom_call.1} parent=5 // pred_check_branch
        %137 = sbr.rel (%p135) target = $region20
      $region19: #{tpu_custom_call.1} parent=5 // pred_region
        // Predicated region
        $region21: #{tpu_custom_call.1} parent=19 // pred_check
          %p138 = pneg %p76
        $region22: #{tpu_custom_call.1} parent=19 // pred_check_branch
          %140 = sbr.rel (%p138) target = $region24
        $region23: #{tpu_custom_call.1} parent=19 // pred_region
          %s141 = sand.u32 %s66, 1
          %s142 = scalar_lea.sflag [#allocation6], %s141
          %s143 = sand.u32 %s66, 1
          %s144 = smul.addr %s143, 16
          %s145 = scalar_lea.vmem [#allocation5], %s144
          %p146 = scmp.lt.s32.totalorder %s23, 1
          %s147 = ssub.s32 %s23, 1
          %s148 = scalar_select %p146, %s23, %s147
          %s149 = smul.u32 2, %s22
          %s150 = smul.u32 2, %s148
          %152 = vsyncadd %s142, 0
          %s153 = smul.addr %s149, 2
          %s154 = sadd.s32 %s150, %s153
          %s155 = smul.addr %s154, 4
          %s156 = scalar_lea.hbm %s1, %s155
          %s157 = sshll.u32 %s156, 4
          %s158 = int_to_ptr.hbm [resolvable:$true] %s157
          %s159 = sshll.u32 %s145, 4
          %s160 = int_to_ptr.vmem [resolvable:$true] %s159
          %165 = dma.hbm_to_vmem [thread:$0]  %s158, 256, %s160, %s142, 128, 128, 8
        $region24: #{tpu_custom_call.1} parent=19 // pred_fallthru
          _
      $region20: #{tpu_custom_call.1} parent=5 // pred_fallthru
        _
      %p166 = scmp.le.s32.totalorder 1, %s15
      %p167 = scmp.lt.s32.totalorder %s15, 3
      %p168 = pnand %p166, %p167
      %p169 = pneg %p168
      // Predicated region
      $region25: #{tpu_custom_call.1} parent=5 // pred_check
        _
      $region26: #{tpu_custom_call.1} parent=5 // pred_check_branch
        %171 = sbr.rel (%p168) target = $region28
      $region27: #{tpu_custom_call.1} parent=5 // pred_region
        %s172 = ssub.s32 %s15, 1
        %s173 = sand.u32 %s69, 1
        %s174 = scalar_lea.sflag [#allocation6], %s173
        %s175 = sand.u32 %s69, 1
        %s176 = smul.addr %s175, 16
        %s177 = scalar_lea.vmem [#allocation5], %s176
        // Predicated region
        $region29: #{tpu_custom_call.1} parent=27 // pred_check
          %p178 = pneg %p82
        $region30: #{tpu_custom_call.1} parent=27 // pred_check_branch
          %180 = sbr.rel (%p178) target = $region32
        $region31: #{tpu_custom_call.1} parent=27 // pred_region
          %182 = dma.done %s174, 256
        $region32: #{tpu_custom_call.1} parent=27 // pred_fallthru
          _
        %p183 = pneg %p48
        %p184 = pneg %p45
        %s185 = sand.u32 %s69, 1
        %s186 = scalar_lea.sflag [#allocation6], %s185
        %s187 = sand.u32 %s69, 1
        %s188 = smul.addr %s187, 16
        %s189 = scalar_lea.vmem [#allocation5], %s188
        %p190 = pneg %p82
        %p191 = pneg %p79
        %p192 = pneg %p116
        %p193 = pneg %p113
        %s194 = sand.u32 %s103, 1
        %s195 = scalar_lea.sflag [#allocation7], %s194
        %s196 = sand.u32 %s103, 1
        %s197 = smul.addr %s196, 16
        %s198 = scalar_lea.vmem [#allocation8], %s197
        %p199 = scmp.lt.s32.totalorder %s25, 1
        %s200 = ssub.s32 %s25, 1
        %s201 = scalar_select %p199, %s25, %s200
        %s202 = smul.u32 2, %s24
        %s203 = smul.u32 2, %s201
        %p204 = scmp.lt.s32.totalorder %s25, 1
        %s205 = ssub.s32 %s25, 1
        %s206 = scalar_select %p204, 0, %s205
        %s207 = smul.u32 2, %s24
        %s208 = smul.u32 2, %s206
        %p210 = scmp.eq.s32.totalorder %s25, 0
        // Predicated region
        $region33: #{tpu_custom_call.1} parent=27 // pred_check
          %p211 = pneg %p210
        $region34: #{tpu_custom_call.1} parent=27 // pred_check_branch
          %213 = sbr.rel (%p211) target = $region36
        $region35: #{tpu_custom_call.1} parent=27 // pred_region
          %vm214 = vcmask 27648
          %215 = vst.msk [vmem:[#allocation2] sm:$0xf] %vm214, 0.0
          %216 = vst.msk [vmem:[#allocation2 + $0x4] sm:$0xf] %vm214, 0.0
        $region36: #{tpu_custom_call.1} parent=27 // pred_fallthru
          _
        %p217 = scmp.lt.s32.totalorder %s25, 1
        // Predicated region
        $region37: #{tpu_custom_call.1} parent=27 // pred_check
          %p218 = pneg %p217
        $region38: #{tpu_custom_call.1} parent=27 // pred_check_branch
          %220 = sbr.rel (%p218) target = $region40
        $region39: #{tpu_custom_call.1} parent=27 // pred_region
          %v221 = vld [vmem:[%s177] sm:$0xff]
          %v222 = vld [vmem:[%s177 + $0x8] sm:$0xff]
          %225 = vst [vmem:[#allocation1] ss:$2 sm:$0xff] %v221
          %v226 = vld.sshfl [vmem:[#allocation1] sm:$0xff pattern:$0x75316420]
          %v227 = vld.sshfl [vmem:[#allocation1 + $0x8] sm:$0xff pattern:$0x75316420]
          %s228 = scalar_lea.vmem [#allocation1], 16
          %229 = vst [vmem:[%s228] ss:$2 sm:$0xff] %v222
          %v230 = vld.sshfl [vmem:[#allocation1 + $0x10] sm:$0xff pattern:$0x75316420]
          %v231 = vld.sshfl [vmem:[#allocation1 + $0x18] sm:$0xff pattern:$0x75316420]
          %v236 = vpack.c.bf16 %v227, %v226
          %v237 = vpack.c.bf16 %v231, %v230
          %v238 = vld [vmem:[#allocation2] sm:$0xf]
          %v239 = vld [vmem:[#allocation2 + $0x4] sm:$0xf]
          %v241 = vunpack.c.l.b16 %v236
          %v242 = vunpack.c.h.b16 %v236
          %v243 = vpack.c.b16 %v241, %v241
          %v244 = vpack.c.b16 %v242, %v242
          %247 = vmatpush.bf16.xpose.msra.mxu0 0
          %248 = vmatpush.bf16.xpose.msra.mxu0 0
          %249 = vmatpush.bf16.xpose.msra.mxu0 0
          %250 = vmatpush.bf16.xpose.msra.mxu0 0
          %251 = vmatpush.bf16.xpose.msra.mxu0 0
          %252 = vmatpush.bf16.xpose.msra.mxu0 0
          %253 = vmatpush.bf16.xpose.msra.mxu0 0
          %254 = vmatpush.bf16.xpose.msra.mxu0 %v243
          %255 = vmatmul.bf16.gmra.mxu0 %v243
          %v256 = vpop.f32.mrf.mxu0
          %v257 = vadd.f32 0.0, %v256
          %v258 = vpop.f32.mrf.mxu0
          %259 = vdwg.mxu0
          %260 = vmatpush.bf16.xpose.msra.mxu0 0
          %261 = vmatpush.bf16.xpose.msra.mxu0 0
          %262 = vmatpush.bf16.xpose.msra.mxu0 0
          %263 = vmatpush.bf16.xpose.msra.mxu0 0
          %264 = vmatpush.bf16.xpose.msra.mxu0 0
          %265 = vmatpush.bf16.xpose.msra.mxu0 0
          %266 = vmatpush.bf16.xpose.msra.mxu0 0
          %267 = vmatpush.bf16.xpose.msra.mxu0 %v244
          %268 = vmatmul.bf16.gmra.mxu0 %v244
          %v269 = vpop.f32.mrf.mxu0
          %v270 = vadd.f32 %v257, %v269
          %v271 = vpop.f32.mrf.mxu0
          %272 = vdwg.mxu0
          %v274 = vunpack.c.l.b16 %v237
          %v275 = vunpack.c.h.b16 %v237
          %v276 = vpack.c.b16 %v274, %v274
          %v277 = vpack.c.b16 %v275, %v275
          %280 = vmatpush.bf16.xpose.msra.mxu0 0
          %281 = vmatpush.bf16.xpose.msra.mxu0 0
          %282 = vmatpush.bf16.xpose.msra.mxu0 0
          %283 = vmatpush.bf16.xpose.msra.mxu0 0
          %284 = vmatpush.bf16.xpose.msra.mxu0 0
          %285 = vmatpush.bf16.xpose.msra.mxu0 0
          %286 = vmatpush.bf16.xpose.msra.mxu0 0
          %287 = vmatpush.bf16.xpose.msra.mxu0 %v276
          %288 = vmatmul.bf16.gmra.mxu0 %v276
          %v289 = vpop.f32.mrf.mxu0
          %v290 = vadd.f32 0.0, %v289
          %v291 = vpop.f32.mrf.mxu0
          %292 = vdwg.mxu0
          %293 = vmatpush.bf16.xpose.msra.mxu0 0
          %294 = vmatpush.bf16.xpose.msra.mxu0 0
          %295 = vmatpush.bf16.xpose.msra.mxu0 0
          %296 = vmatpush.bf16.xpose.msra.mxu0 0
          %297 = vmatpush.bf16.xpose.msra.mxu0 0
          %298 = vmatpush.bf16.xpose.msra.mxu0 0
          %299 = vmatpush.bf16.xpose.msra.mxu0 0
          %300 = vmatpush.bf16.xpose.msra.mxu0 %v277
          %301 = vmatmul.bf16.gmra.mxu0 %v277
          %v302 = vpop.f32.mrf.mxu0
          %v303 = vadd.f32 %v290, %v302
          %v304 = vpop.f32.mrf.mxu0
          %305 = vdwg.mxu0
          %v306 = vadd.f32 %v238, %v270
          %v307 = vadd.f32 %v239, %v303
          %vm308 = vcmask 27648
          %309 = vst.msk [vmem:[#allocation2] sm:$0xf] %vm308, %v306
          %310 = vst.msk [vmem:[#allocation2 + $0x4] sm:$0xf] %vm308, %v307
        $region40: #{tpu_custom_call.1} parent=27 // pred_fallthru
          _
        // Predicated region
        $region41: #{tpu_custom_call.1} parent=27 // pred_check
          %p311 = pneg %p210
        $region42: #{tpu_custom_call.1} parent=27 // pred_check_branch
          %313 = sbr.rel (%p311) target = $region44
        $region43: #{tpu_custom_call.1} parent=27 // pred_region
          %v314 = vld [vmem:[#allocation2] sm:$0xf]
          %v315 = vld [vmem:[#allocation2 + $0x4] sm:$0xf]
          %vm316 = vcmask 27648
          %v317 = vsel %vm316, %v314, inf
          %318 = vmin.xlane.f32.xlu0 %v317
          %v319 = vpop.xlane.xlu0 %318
          %v320 = vsel %vm316, %v315, inf
          %321 = vmin.xlane.f32.xlu0 %v320
          %v322 = vpop.xlane.xlu0 %321
          %v323 = vsub.f32 %v319, %v314
          %v324 = vsub.f32 %v322, %v315
          %v325 = vmul.f32 %v323, 1.442695
          %v326 = vpow.pop %v325
          %v327 = vmul.f32 %v324, 1.442695
          %v328 = vpow.pop %v327
          %v329 = vsel %vm316, %v326, 0.0
          %330 = vadd.xlane.f32.xlu0 %v329
          %v331 = vpop.xlane.xlu0 %330
          %v332 = vsel %vm316, %v328, 0.0
          %333 = vadd.xlane.f32.xlu0 %v332
          %v334 = vpop.xlane.xlu0 %333
          %v335 = vrcp.pop %v331
          %v336 = vrcp.pop %v334
          %v337 = vmul.f32 %v326, %v335
          %v338 = vmul.f32 %v328, %v336
          %v339 = vpack.c.bf16 %v337, %v337
          %v340 = vpack.c.bf16 %v338, %v338
          %vm341 = vcmask 25600
          %342 = vst.msk [vmem:[#allocation3] sm:$0x3] %vm341, %v339
          %343 = vst.msk [vmem:[#allocation3 + $0x2] sm:$0x3] %vm341, %v340
        $region44: #{tpu_custom_call.1} parent=27 // pred_fallthru
          _
        %p344 = scmp.ge.s32.totalorder %s25, 1
        // Predicated region
        $region45: #{tpu_custom_call.1} parent=27 // pred_check
          %p345 = pneg %p344
        $region46: #{tpu_custom_call.1} parent=27 // pred_check_branch
          %347 = sbr.rel (%p345) target = $region48
        $region47: #{tpu_custom_call.1} parent=27 // pred_region
          %v348 = vld [vmem:[%s177] sm:$0xff]
          %v349 = vld [vmem:[%s177 + $0x8] sm:$0xff]
          %v350 = vld [vmem:[#allocation3] sm:$0x3]
          %v351 = vld [vmem:[#allocation3 + $0x2] sm:$0x3]
          %354 = vst [vmem:[#allocation1] ss:$2 sm:$0xff] %v348
          %v355 = vld.sshfl [vmem:[#allocation1] sm:$0xff pattern:$0x75316420]
          %v356 = vld.sshfl [vmem:[#allocation1 + $0x8] sm:$0xff pattern:$0x75316420]
          %s357 = scalar_lea.vmem [#allocation1], 16
          %358 = vst [vmem:[%s357] ss:$2 sm:$0xff] %v349
          %v359 = vld.sshfl [vmem:[#allocation1 + $0x10] sm:$0xff pattern:$0x75316420]
          %v360 = vld.sshfl [vmem:[#allocation1 + $0x18] sm:$0xff pattern:$0x75316420]
          %v365 = vpack.c.bf16 %v356, %v355
          %v366 = vpack.c.bf16 %v360, %v359
          %v368 = vunpack.c.l.b16 %v365
          %v369 = vunpack.c.h.b16 %v365
          %v370 = vpack.c.b16 %v368, %v368
          %v371 = vpack.c.b16 %v369, %v369
          %vm372 = vcmask 31744
          %v374 = vsel %vm372, %v350, 0
          %vm376 = vcmask 1041408
          %v378 = vsel %vm376, %v370, 0
          %v381 = vsel %vm376, %v371, 0
          %383 = vmatpush.bf16.msra.mxu0 0
          %384 = vmatpush.bf16.msra.mxu0 0
          %385 = vmatpush.bf16.msra.mxu0 0
          %386 = vmatpush.bf16.msra.mxu0 0
          %387 = vmatpush.bf16.msra.mxu0 0
          %388 = vmatpush.bf16.msra.mxu0 0
          %389 = vmatpush.bf16.msra.mxu0 0
          %390 = vmatpush.bf16.msra.mxu0 %v378
          %391 = vmatmul.bf16.gmra.mxu0 %v374
          %v392 = vpop.f32.mrf.mxu0
          %v393 = vadd.f32 0.0, %v392
          %v394 = vpop.f32.mrf.mxu0
          %395 = vdwg.mxu0
          %396 = vmatpush.bf16.msra.mxu0 0
          %397 = vmatpush.bf16.msra.mxu0 0
          %398 = vmatpush.bf16.msra.mxu0 0
          %399 = vmatpush.bf16.msra.mxu0 0
          %400 = vmatpush.bf16.msra.mxu0 0
          %401 = vmatpush.bf16.msra.mxu0 0
          %402 = vmatpush.bf16.msra.mxu0 0
          %403 = vmatpush.bf16.msra.mxu0 %v381
          %404 = vmatmul.bf16.gmra.mxu0 %v374
          %v405 = vpop.f32.mrf.mxu0
          %v406 = vadd.f32 0.0, %v405
          %v407 = vpop.f32.mrf.mxu0
          %408 = vdwg.mxu0
          %v410 = vunpack.c.l.b16 %v366
          %v411 = vunpack.c.h.b16 %v366
          %v412 = vpack.c.b16 %v410, %v410
          %v413 = vpack.c.b16 %v411, %v411
          %v415 = vsel %vm372, %v351, 0
          %v418 = vsel %vm376, %v412, 0
          %v421 = vsel %vm376, %v413, 0
          %423 = vmatpush.bf16.msra.mxu0 0
          %424 = vmatpush.bf16.msra.mxu0 0
          %425 = vmatpush.bf16.msra.mxu0 0
          %426 = vmatpush.bf16.msra.mxu0 0
          %427 = vmatpush.bf16.msra.mxu0 0
          %428 = vmatpush.bf16.msra.mxu0 0
          %429 = vmatpush.bf16.msra.mxu0 0
          %430 = vmatpush.bf16.msra.mxu0 %v418
          %431 = vmatmul.bf16.gmra.mxu0 %v415
          %v432 = vpop.f32.mrf.mxu0
          %v433 = vadd.f32 0.0, %v432
          %v434 = vpop.f32.mrf.mxu0
          %435 = vdwg.mxu0
          %436 = vmatpush.bf16.msra.mxu0 0
          %437 = vmatpush.bf16.msra.mxu0 0
          %438 = vmatpush.bf16.msra.mxu0 0
          %439 = vmatpush.bf16.msra.mxu0 0
          %440 = vmatpush.bf16.msra.mxu0 0
          %441 = vmatpush.bf16.msra.mxu0 0
          %442 = vmatpush.bf16.msra.mxu0 0
          %443 = vmatpush.bf16.msra.mxu0 %v421
          %444 = vmatmul.bf16.gmra.mxu0 %v415
          %v445 = vpop.f32.mrf.mxu0
          %v446 = vadd.f32 0.0, %v445
          %v447 = vpop.f32.mrf.mxu0
          %448 = vdwg.mxu0
          %s449 = sld [smem:[#allocation4]]
          %v450 = vstv %s449
          %v451 = vmul.f32 %v450, %v393
          %v452 = vmul.f32 %v450, %v406
          %v453 = vmul.f32 %v450, %v433
          %v454 = vmul.f32 %v450, %v446
          %455 = vst [vmem:[#allocation1] ss:$2 sm:$0xff] %v348
          %v456 = vld.sshfl [vmem:[#allocation1] sm:$0xff pattern:$0x75316420]
          %v457 = vld.sshfl [vmem:[#allocation1 + $0x8] sm:$0xff pattern:$0x75316420]
          %s458 = scalar_lea.vmem [#allocation1], 16
          %459 = vst [vmem:[%s458] ss:$2 sm:$0xff] %v349
          %v460 = vld.sshfl [vmem:[#allocation1 + $0x10] sm:$0xff pattern:$0x75316420]
          %v461 = vld.sshfl [vmem:[#allocation1 + $0x18] sm:$0xff pattern:$0x75316420]
          %v466 = vadd.f32 %v451, %v456
          %v467 = vadd.f32 %v452, %v457
          %v468 = vadd.f32 %v453, %v460
          %v469 = vadd.f32 %v454, %v461
          %v474 = vrot.slane %v467, 4
          %v475 = vrot.slane %v469, 4
          %vm476 = vcmask 1043456
          %v477 = vsel %vm476, %v466, %v474
          %v478 = vsel %vm476, %v468, %v475
          %481 = vst [vmem:[%s198] sm:$0xff] %v477
          %482 = vst [vmem:[%s198 + $0x8] sm:$0xff] %v478
        $region48: #{tpu_custom_call.1} parent=27 // pred_fallthru
          _
        %s483 = sand.u32 %s103, 1
        %s484 = scalar_lea.sflag [#allocation7], %s483
        %s485 = sand.u32 %s103, 1
        %s486 = smul.addr %s485, 16
        %s487 = scalar_lea.vmem [#allocation8], %s486
        // Predicated region
        $region49: #{tpu_custom_call.1} parent=27 // pred_check
          %p488 = pneg %p113
        $region50: #{tpu_custom_call.1} parent=27 // pred_check_branch
          %490 = sbr.rel (%p488) target = $region52
        $region51: #{tpu_custom_call.1} parent=27 // pred_region
          %p491 = scmp.lt.s32.totalorder %s25, 1
          %s492 = ssub.s32 %s25, 1
          %s493 = scalar_select %p491, 0, %s492
          %s494 = smul.u32 2, %s24
          %s495 = smul.u32 2, %s493
          %497 = vsyncadd %s484, 0
          %s498 = smul.addr %s494, 2
          %s499 = sadd.s32 %s495, %s498
          %s500 = smul.addr %s499, 4
          %s501 = scalar_lea.hbm %s2, %s500
          %s502 = sshll.u32 %s487, 4
          %s503 = int_to_ptr.vmem [resolvable:$true] %s502
          %s504 = sshll.u32 %s501, 4
          %s505 = int_to_ptr.hbm [resolvable:$true] %s504
          %510 = dma.vmem_to_hbm [thread:$0]  %s503, 256, %s505, %s484, 128, 128, 8
        $region52: #{tpu_custom_call.1} parent=27 // pred_fallthru
          _
      $region28: #{tpu_custom_call.1} parent=5 // pred_fallthru
        _
      %p511 = scmp.le.s32.totalorder 2, %s15
      // Predicated region
      $region53: #{tpu_custom_call.1} parent=5 // pred_check
        %p512 = pneg %p511
      $region54: #{tpu_custom_call.1} parent=5 // pred_check_branch
        %514 = sbr.rel (%p512) target = $region56
      $region55: #{tpu_custom_call.1} parent=5 // pred_region
        %s515 = ssub.s32 %s15, 2
        // Predicated region
        $region57: #{tpu_custom_call.1} parent=55 // pred_check
          %p516 = pneg %p119
        $region58: #{tpu_custom_call.1} parent=55 // pred_check_branch
          %518 = sbr.rel (%p516) target = $region60
        $region59: #{tpu_custom_call.1} parent=55 // pred_region
          %s519 = sand.u32 %s104, 1
          %s520 = scalar_lea.sflag [#allocation7], %s519
          %s521 = sand.u32 %s104, 1
          %s522 = smul.addr %s521, 16
          %s523 = scalar_lea.vmem [#allocation8], %s522
          %525 = dma.done %s520, 256
        $region60: #{tpu_custom_call.1} parent=55 // pred_fallthru
          _
      $region56: #{tpu_custom_call.1} parent=5 // pred_fallthru
        _
    $region6: #{tpu_custom_call.1} parent=1 // loop_footer
      %s19 = sadd.s32 1, %s15
    $region7: #{tpu_custom_call.1} parent=1 // loop_footer_branch
      %14 = sbr.rel target = $region3
    $region8: #{tpu_custom_call.1} parent=1 // loop_exit
      _
    %526 = vsyncpa [#allocation6], 1
    %s527 = scalar_lea.sflag [#allocation6], 1
    %528 = vsyncpa %s527, 1
    %529 = vsyncpa [#allocation7], 1
    %s530 = scalar_lea.sflag [#allocation7], 1
    %531 = vsyncpa %s530, 1

</llo_original>
